<compile_context>
chip_gen: v5e
topology: v5e:2x2
jax: 0.10.0
libtpu: 0.0.40
codegen_flags: <defaults>
</compile_context>

<pallas_src>
import functools

import jax
import jax.numpy as jnp
import numpy as np
from jax import lax
from jax.experimental import pallas as pl
from jax.experimental.pallas import tpu as pltpu


def _round_up(x, m):
    return ((x + m - 1) // m) * m


def _tpu_has_bf16_eup():
    """bf16 transcendental path exists on v6e / v7x (not on v5e and older)."""
    try:
        kind = jax.devices()[0].device_kind.lower()
    except Exception:
        return False
    return ("v6" in kind) or ("v7" in kind)


# --------------------------- Pass 1: fused QKV projection ---------------------------

def qkv_proj_kernel(x_ref, w_ref, b_ref, q_ref, k_ref, v_ref, *, c8p):
    # x_ref: (1, C, BLK) bf16; w_ref: (2*C8p + C, C) bf16; b_ref: (2*C8p + C, 1) f32.
    x = x_ref[0]
    y = jnp.dot(w_ref[...], x, preferred_element_type=jnp.float32) + b_ref[...]
    q_ref[0] = y[:c8p].astype(q_ref.dtype)                 # (C8p, BLK)
    k_ref[0] = y[c8p:2 * c8p].astype(k_ref.dtype)          # (C8p, BLK) -- lane-dense, NOT transposed
    v_ref[0] = y[2 * c8p:].astype(v_ref.dtype)             # (C,   BLK)


# --------------------------- Pass 2: attention + residual ---------------------------

def _online_softmax_step(s, m, l, acc, v_tile, exp_dtype):
    # s: (BLKk, BLKq) f32 energies (keys on sublanes, queries on lanes).
    m_new = jnp.maximum(m, jnp.max(s, axis=0, keepdims=True))        # (1, BLKq)
    alpha = jnp.exp(m - m_new)                                        # (1, BLKq) f32
    p = jnp.exp((s - m_new).astype(exp_dtype))                        # (BLKk, BLKq)
    l_new = alpha * l + jnp.sum(p.astype(jnp.float32), axis=0, keepdims=True)
    # acc[c, i] += sum_j v[c, j] * p[j, i]  -> plain NN MXU matmul, no transposes.
    acc_new = alpha * acc + jnp.dot(v_tile, p.astype(v_tile.dtype),
                                    preferred_element_type=jnp.float32)
    return m_new, l_new, acc_new


def attn_kernel(q_ref, k_ref, v_ref, x_ref, gamma_ref, o_ref, *,
                blk_k, nk_full, n_real, mask_last, exp_dtype):
    # q_ref: (1, C8p, BLKq) bf16 query tile.
    # k_ref: (1, C8p, Np) bf16, v_ref: (1, C, Np) bf16 -- VMEM-resident per batch.
    # x_ref: (1, C, BLKq) f32 residual tile; gamma_ref: (1, 1) f32 in SMEM.
    q = q_ref[0]
    c = v_ref.shape[1]
    blk_q = q.shape[-1]

    def energy(k_tile):
        # s[j, i] = sum_c k[c, j] * q[c, i]  (contract dim 0 of both operands).
        return lax.dot_general(k_tile, q, (((0,), (0,)), ((), ())),
                               preferred_element_type=jnp.float32)

    m = jnp.full((1, blk_q), -jnp.inf, dtype=jnp.float32)
    l = jnp.zeros((1, blk_q), dtype=jnp.float32)
    acc = jnp.zeros((c, blk_q), dtype=jnp.float32)

    if nk_full > 0:
        def body(t, carry):
            m, l, acc = carry
            start = pl.multiple_of(t * blk_k, blk_k)
            kt = k_ref[0, :, pl.ds(start, blk_k)]                     # (C8p, BLKk)
            vt = v_ref[0, :, pl.ds(start, blk_k)]                     # (C,   BLKk)
            return _online_softmax_step(energy(kt), m, l, acc, vt, exp_dtype)
        m, l, acc = lax.fori_loop(0, nk_full, body, (m, l, acc))

    if mask_last:
        # Only the last key tile contains padded positions; handle it unrolled so
        # fully-valid tiles pay no iota/compare/select.
        start = nk_full * blk_k
        kt = k_ref[0, :, pl.ds(start, blk_k)]
        vt = v_ref[0, :, pl.ds(start, blk_k)]
        s = energy(kt)
        key_idx = lax.broadcasted_iota(jnp.int32, s.shape, 0) + start
        s = jnp.where(key_idx < n_real, s, -1e30)
        m, l, acc = _online_softmax_step(s, m, l, acc, vt, exp_dtype)

    out = acc * pl.reciprocal(l, approx=True)                         # (C, BLKq)
    o_ref[0] = (gamma_ref[0, 0] * out + x_ref[0]).astype(o_ref.dtype)


# --------------------------------- Wrapper ---------------------------------

def attention_block(x, wq, bq, wk, bk, wv, bv, gamma, *, blk=512):
    """x: (B, C, H, W) f32. wq/wk: (C//8, C), wv: (C, C), biases (*, 1), gamma (1, 1)."""
    B, C, H, W = x.shape
    N = H * W
    C8 = wq.shape[0]

    # Lane-dense spatial tiling; clamp the tile to the 128-aligned extent.
    blk = max(128, min(blk, _round_up(N, 128)))
    Np = _round_up(N, blk)
    n_pad = Np - N
    nblk = Np // blk

    # Pad q/k projection channels up to a multiple of 8 sublanes (zero rows: exact).
    C8p = _round_up(max(C8, 8), 8)

    xf = x.reshape(B, C, N)
    if n_pad:
        xf = jnp.pad(xf, ((0, 0), (0, 0), (0, n_pad)))
    xf_bf16 = xf.astype(jnp.bfloat16)            # matmul-only copy for pass 1

    def pad_rows(a):
        return jnp.pad(a, ((0, C8p - C8), (0, 0))) if C8p != C8 else a

    # Fused projection: one (2*C8p + C, C) matmul per spatial tile instead of three.
    w_qkv = jnp.concatenate([pad_rows(wq), pad_rows(wk), wv], axis=0).astype(jnp.bfloat16)
    b_qkv = jnp.concatenate([pad_rows(bq), pad_rows(bk), bv], axis=0).astype(jnp.float32)
    R = 2 * C8p + C

    # ---- Pass 1: fused QKV projection (1x1 convs) over lane-dense spatial tiles ----
    q, k, v = pl.pallas_call(
        functools.partial(qkv_proj_kernel, c8p=C8p),
        out_shape=(jax.ShapeDtypeStruct((B, C8p, Np), jnp.bfloat16),
                   jax.ShapeDtypeStruct((B, C8p, Np), jnp.bfloat16),
                   jax.ShapeDtypeStruct((B, C, Np), jnp.bfloat16)),
        grid=(B, nblk),
        in_specs=[
            pl.BlockSpec((1, C, blk), lambda b, n: (b, 0, n)),
            pl.BlockSpec((R, C), lambda b, n: (0, 0)),
            pl.BlockSpec((R, 1), lambda b, n: (0, 0)),
        ],
        out_specs=(
            pl.BlockSpec((1, C8p, blk), lambda b, n: (b, 0, n)),
            pl.BlockSpec((1, C8p, blk), lambda b, n: (b, 0, n)),
            pl.BlockSpec((1, C, blk), lambda b, n: (b, 0, n)),
        ),
        compiler_params=pltpu.CompilerParams(
            dimension_semantics=("parallel", "parallel")),
    )(xf_bf16, w_qkv, b_qkv)

    # ---- Pass 2: flash-style attention + residual; K/V VMEM-resident per batch ----
    # VMEM budget: double-buffered K/V + double-buffered q/x/out tiles + f32 accumulator.
    kv_bytes = 2 * (C8p + C) * Np * 2
    tile_bytes = 2 * (C8p * blk * 2 + C * blk * 4 + C * blk * 4) + C * blk * 4
    vmem_limit = int(min(64 * 2 ** 20, max(32 * 2 ** 20, 2 * (kv_bytes + tile_bytes))))
    # TODO(synk): if H*W grows so large that resident K/V no longer fit the VMEM
    # budget, fall back to a key-tiled (B, nq, nk) grid with online-softmax scratch.

    exp_dtype = jnp.bfloat16 if _tpu_has_bf16_eup() else jnp.float32
    kernel = functools.partial(
        attn_kernel,
        blk_k=blk,
        nk_full=nblk - (1 if n_pad else 0),
        n_real=N,
        mask_last=bool(n_pad),
        exp_dtype=exp_dtype)

    out = pl.pallas_call(
        kernel,
        out_shape=jax.ShapeDtypeStruct((B, C, Np), x.dtype),
        grid=(B, nblk),
        in_specs=[
            pl.BlockSpec((1, C8p, blk), lambda b, qi: (b, 0, qi)),   # q (query tile)
            pl.BlockSpec((1, C8p, Np), lambda b, qi: (b, 0, 0)),     # k (resident per batch)
            pl.BlockSpec((1, C, Np), lambda b, qi: (b, 0, 0)),       # v (resident per batch)
            pl.BlockSpec((1, C, blk), lambda b, qi: (b, 0, qi)),     # x (residual)
            pl.BlockSpec((1, 1), lambda b, qi: (0, 0),
                         memory_space=pltpu.MemorySpace.SMEM),       # gamma scalar
        ],
        out_specs=pl.BlockSpec((1, C, blk), lambda b, qi: (b, 0, qi)),
        input_output_aliases={3: 0},                                 # residual -> output
        compiler_params=pltpu.CompilerParams(
            dimension_semantics=("parallel", "parallel"),
            vmem_limit_bytes=vmem_limit),
    )(q, k, v, xf, gamma)

    return out[:, :, :N].reshape(B, C, H, W)


def attention_block_reference(x, wq, bq, wk, bk, wv, bv, gamma):
    """Pure-JAX f32 reference matching the PyTorch forward."""
    B, C, H, W = x.shape
    N = H * W
    xf = x.reshape(B, C, N)
    q = jnp.einsum('oc,bcn->bon', wq, xf) + bq[None]          # (B, C8, N)
    k = jnp.einsum('oc,bcn->bon', wk, xf) + bk[None]          # (B, C8, N)
    v = jnp.einsum('oc,bcn->bon', wv, xf) + bv[None]          # (B, C,  N)
    energy = jnp.einsum('bcn,bcm->bnm', q, k)                 # (B, N, N)
    att = jax.nn.softmax(energy, axis=-1)
    out = jnp.einsum('bcj,bij->bci', v, att)                  # (B, C, N)
    return gamma[0, 0] * out.reshape(B, C, H, W) + x


if __name__ == "__main__":
    # (B, C, H, W, blk): covers a single masked key tile, a multi-tile key loop
    # with a masked tail, and a no-padding multi-tile case with different C.
    configs = [
        (2, 16, 8, 8, 512),
        (2, 16, 12, 11, 128),
        (1, 32, 16, 16, 128),
    ]

    for idx, (B, C, H, W, blk) in enumerate(configs):
        C8 = C // 8
        key = jax.random.fold_in(jax.random.PRNGKey(0), idx)
        kx, kq, kbq, kk, kbk, kv, kbv = jax.random.split(key, 7)

        x = jax.random.normal(kx, (B, C, H, W), dtype=jnp.float32)
        # Conv2d 1x1 weights == (out_ch, in_ch) matrices; biases as (out_ch, 1).
        wq = 0.1 * jax.random.normal(kq, (C8, C), dtype=jnp.float32)
        bq = 0.1 * jax.random.normal(kbq, (C8, 1), dtype=jnp.float32)
        wk = 0.1 * jax.random.normal(kk, (C8, C), dtype=jnp.float32)
        bk = 0.1 * jax.random.normal(kbk, (C8, 1), dtype=jnp.float32)
        wv = 0.1 * jax.random.normal(kv, (C, C), dtype=jnp.float32)
        bv = 0.1 * jax.random.normal(kbv, (C, 1), dtype=jnp.float32)
        # PyTorch init is gamma = 0 (output == x); use a nonzero value so the
        # attention path is actually exercised.
        gamma = jnp.full((1, 1), 0.5, dtype=jnp.float32)

        fn = jax.jit(functools.partial(attention_block, blk=blk))
        out = jax.block_until_ready(fn(x, wq, bq, wk, bk, wv, bv, gamma))

        ref = attention_block_reference(x, wq, bq, wk, bk, wv, bv, gamma)
        # bf16 MXU operands / bf16 exp on v6e+/ approx reciprocal -> loose tolerance.
        np.testing.assert_allclose(np.asarray(out), np.asarray(ref),
                                   atol=3e-2, rtol=3e-2)

    print("KERNEL_OK")
</pallas_src>

<mosaic_0001>
module attributes {stable_mosaic.version = 11 : i64} {
  func.func @qkv_proj_kernel(%arg0: i32, %arg1: i32, %arg2: memref<1x16x128xbf16, #tpu.memory_space<vmem>>, %arg3: memref<32x16xbf16, #tpu.memory_space<vmem>>, %arg4: memref<32x1xf32, #tpu.memory_space<vmem>>, %arg5: memref<1x8x128xbf16, #tpu.memory_space<vmem>>, %arg6: memref<1x8x128xbf16, #tpu.memory_space<vmem>>, %arg7: memref<1x16x128xbf16, #tpu.memory_space<vmem>>) attributes {dimension_semantics = [#tpu.dimension_semantics<parallel>, #tpu.dimension_semantics<parallel>], iteration_bounds = array<i64: 2, 1>, scalar_prefetch = 0 : i64, scratch_operands = 0 : i64, tpu.core_type = #tpu.core_type<tc>, window_params = [{transform_indices = @transform_0, window_bounds = array<i64: 1, 16, 128>}, {pipeline_mode = #tpu.pipeline_mode<synchronous>, transform_indices = @transform_1, window_bounds = array<i64: 32, 16>}, {pipeline_mode = #tpu.pipeline_mode<synchronous>, transform_indices = @transform_2, window_bounds = array<i64: 32, 1>}, {transform_indices = @transform_3, window_bounds = array<i64: 1, 8, 128>}, {transform_indices = @transform_4, window_bounds = array<i64: 1, 8, 128>}, {transform_indices = @transform_5, window_bounds = array<i64: 1, 16, 128>}]} {
    %c0 = arith.constant 0 : index
    %c0_0 = arith.constant 0 : index
    %c0_1 = arith.constant 0 : index
    %0 = vector.load %arg2[%c0, %c0_0, %c0_1] : memref<1x16x128xbf16, #tpu.memory_space<vmem>>, vector<1x16x128xbf16>
    %1 = vector.shape_cast %0 : vector<1x16x128xbf16> to vector<16x128xbf16>
    %c0_2 = arith.constant 0 : index
    %c0_3 = arith.constant 0 : index
    %2 = vector.load %arg3[%c0_2, %c0_3] : memref<32x16xbf16, #tpu.memory_space<vmem>>, vector<32x16xbf16>
    %cst = arith.constant dense<0.000000e+00> : vector<32x128xf32>
    %3 = tpu.matmul %2, %1, %cst {dimension_numbers = #tpu.dot_dimension_numbers<[1], [0], [0], [1], [0, 0, 1, 1], [], []>} : vector<32x16xbf16>, vector<16x128xbf16>, vector<32x128xf32> -> vector<32x128xf32>
    %c0_4 = arith.constant 0 : index
    %c0_5 = arith.constant 0 : index
    %4 = vector.load %arg4[%c0_4, %c0_5] : memref<32x1xf32, #tpu.memory_space<vmem>>, vector<32x1xf32>
    %5 = vector.broadcast %4 : vector<32x1xf32> to vector<32x128xf32>
    %6 = arith.addf %3, %5 : vector<32x128xf32>
    %7 = vector.extract_strided_slice %6 {offsets = [0, 0], sizes = [8, 128], strides = [1, 1]} : vector<32x128xf32> to vector<8x128xf32>
    %8 = arith.truncf %7 : vector<8x128xf32> to vector<8x128xbf16>
    %c0_6 = arith.constant 0 : index
    %c0_7 = arith.constant 0 : index
    %c0_8 = arith.constant 0 : index
    %9 = vector.load %arg5[%c0_6, %c0_7, %c0_8] : memref<1x8x128xbf16, #tpu.memory_space<vmem>>, vector<1x8x128xbf16>
    %10 = vector.shape_cast %9 : vector<1x8x128xbf16> to vector<8x128xbf16>
    %11 = vector.shape_cast %8 : vector<8x128xbf16> to vector<1x8x128xbf16>
    tpu.vector_store %arg5[%c0_6, %c0_7, %c0_8], %11 {strides = array<i32>} : memref<1x8x128xbf16, #tpu.memory_space<vmem>>, vector<1x8x128xbf16>,
    %12 = vector.extract_strided_slice %6 {offsets = [8, 0], sizes = [8, 128], strides = [1, 1]} : vector<32x128xf32> to vector<8x128xf32>
    %13 = arith.truncf %12 : vector<8x128xf32> to vector<8x128xbf16>
    %c0_9 = arith.constant 0 : index
    %c0_10 = arith.constant 0 : index
    %c0_11 = arith.constant 0 : index
    %14 = vector.load %arg6[%c0_9, %c0_10, %c0_11] : memref<1x8x128xbf16, #tpu.memory_space<vmem>>, vector<1x8x128xbf16>
    %15 = vector.shape_cast %14 : vector<1x8x128xbf16> to vector<8x128xbf16>
    %16 = vector.shape_cast %13 : vector<8x128xbf16> to vector<1x8x128xbf16>
    tpu.vector_store %arg6[%c0_9, %c0_10, %c0_11], %16 {strides = array<i32>} : memref<1x8x128xbf16, #tpu.memory_space<vmem>>, vector<1x8x128xbf16>,
    %17 = vector.extract_strided_slice %6 {offsets = [16, 0], sizes = [16, 128], strides = [1, 1]} : vector<32x128xf32> to vector<16x128xf32>
    %18 = arith.truncf %17 : vector<16x128xf32> to vector<16x128xbf16>
    %c0_12 = arith.constant 0 : index
    %c0_13 = arith.constant 0 : index
    %c0_14 = arith.constant 0 : index
    %19 = vector.load %arg7[%c0_12, %c0_13, %c0_14] : memref<1x16x128xbf16, #tpu.memory_space<vmem>>, vector<1x16x128xbf16>
    %20 = vector.shape_cast %19 : vector<1x16x128xbf16> to vector<16x128xbf16>
    %21 = vector.shape_cast %18 : vector<16x128xbf16> to vector<1x16x128xbf16>
    tpu.vector_store %arg7[%c0_12, %c0_13, %c0_14], %21 {strides = array<i32>} : memref<1x16x128xbf16, #tpu.memory_space<vmem>>, vector<1x16x128xbf16>,
    return
  }
  func.func @transform_0(%arg0: i32, %arg1: i32) -> (i32, i32, i32) {
    %c0_i32 = arith.constant 0 : i32
    %c0_i32_0 = arith.constant 0 : i32
    return %arg0, %c0_i32, %arg1 : i32, i32, i32
  }
  func.func @transform_1(%arg0: i32, %arg1: i32) -> (i32, i32) {
    %c0_i32 = arith.constant 0 : i32
    %c0_i32_0 = arith.constant 0 : i32
    %c0_i32_1 = arith.constant 0 : i32
    return %c0_i32, %c0_i32_0 : i32, i32
  }
  func.func @transform_2(%arg0: i32, %arg1: i32) -> (i32, i32) {
    %c0_i32 = arith.constant 0 : i32
    %c0_i32_0 = arith.constant 0 : i32
    %c0_i32_1 = arith.constant 0 : i32
    return %c0_i32, %c0_i32_0 : i32, i32
  }
  func.func @transform_3(%arg0: i32, %arg1: i32) -> (i32, i32, i32) {
    %c0_i32 = arith.constant 0 : i32
    %c0_i32_0 = arith.constant 0 : i32
    return %arg0, %c0_i32, %arg1 : i32, i32, i32
  }
  func.func @transform_4(%arg0: i32, %arg1: i32) -> (i32, i32, i32) {
    %c0_i32 = arith.constant 0 : i32
    %c0_i32_0 = arith.constant 0 : i32
    return %arg0, %c0_i32, %arg1 : i32, i32, i32
  }
  func.func @transform_5(%arg0: i32, %arg1: i32) -> (i32, i32, i32) {
    %c0_i32 = arith.constant 0 : i32
    %c0_i32_0 = arith.constant 0 : i32
    return %arg0, %c0_i32, %arg1 : i32, i32, i32
  }
}

module attributes {stable_mosaic.version = 11 : i64} {
  func.func @attn_kernel(%arg0: i32, %arg1: i32, %arg2: memref<1x8x128xbf16, #tpu.memory_space<vmem>>, %arg3: memref<1x8x128xbf16, #tpu.memory_space<vmem>>, %arg4: memref<1x16x128xbf16, #tpu.memory_space<vmem>>, %arg5: memref<1x16x128xf32, #tpu.memory_space<vmem>>, %arg6: memref<1x1xf32, #tpu.memory_space<smem>>, %arg7: memref<1x16x128xf32, #tpu.memory_space<vmem>>) attributes {dimension_semantics = [#tpu.dimension_semantics<parallel>, #tpu.dimension_semantics<parallel>], iteration_bounds = array<i64: 2, 1>, scalar_prefetch = 0 : i64, scratch_operands = 0 : i64, tpu.core_type = #tpu.core_type<tc>, window_params = [{transform_indices = @transform_0, window_bounds = array<i64: 1, 8, 128>}, {transform_indices = @transform_1, window_bounds = array<i64: 1, 8, 128>}, {transform_indices = @transform_2, window_bounds = array<i64: 1, 16, 128>}, {transform_indices = @transform_3, window_bounds = array<i64: 1, 16, 128>}, {transform_indices = @transform_4, window_bounds = array<i64: 1, 1>}, {transform_indices = @transform_5, window_bounds = array<i64: 1, 16, 128>}]} {
    %c0 = arith.constant 0 : index
    %c0_0 = arith.constant 0 : index
    %c0_1 = arith.constant 0 : index
    %0 = vector.load %arg2[%c0, %c0_0, %c0_1] : memref<1x8x128xbf16, #tpu.memory_space<vmem>>, vector<1x8x128xbf16>
    %1 = vector.shape_cast %0 : vector<1x8x128xbf16> to vector<8x128xbf16>
    %cst = arith.constant 0xFF800000 : f32
    %2 = vector.broadcast %cst : f32 to vector<1x128xf32>
    %cst_2 = arith.constant 0.000000e+00 : f32
    %3 = vector.broadcast %cst_2 : f32 to vector<1x128xf32>
    %cst_3 = arith.constant 0.000000e+00 : f32
    %4 = vector.broadcast %cst_3 : f32 to vector<16x128xf32>
    %c0_4 = arith.constant 0 : index
    %c0_5 = arith.constant 0 : index
    %c0_6 = arith.constant 0 : index
    %5 = vector.load %arg3[%c0_4, %c0_5, %c0_6] : memref<1x8x128xbf16, #tpu.memory_space<vmem>>, vector<1x8x128xbf16>
    %6 = vector.shape_cast %5 : vector<1x8x128xbf16> to vector<8x128xbf16>
    %c0_7 = arith.constant 0 : index
    %c0_8 = arith.constant 0 : index
    %c0_9 = arith.constant 0 : index
    %7 = vector.load %arg4[%c0_7, %c0_8, %c0_9] : memref<1x16x128xbf16, #tpu.memory_space<vmem>>, vector<1x16x128xbf16>
    %8 = vector.shape_cast %7 : vector<1x16x128xbf16> to vector<16x128xbf16>
    %cst_10 = arith.constant dense<0.000000e+00> : vector<128x128xf32>
    %9 = tpu.matmul %6, %1, %cst_10 {dimension_numbers = #tpu.dot_dimension_numbers<[0], [0], [1], [1], [0, 1, 1, 1], [], []>} : vector<8x128xbf16>, vector<8x128xbf16>, vector<128x128xf32> -> vector<128x128xf32>
    %10 = tpu.iota {dimensions = array<i32: 0>} : vector<128x128xi32>
    %c0_i32 = arith.constant 0 : i32
    %11 = vector.broadcast %c0_i32 : i32 to vector<128x128xi32>
    %12 = arith.addi %10, %11 : vector<128x128xi32>
    %c64_i32 = arith.constant 64 : i32
    %13 = vector.broadcast %c64_i32 : i32 to vector<128x128xi32>
    %14 = arith.cmpi slt, %12, %13 : vector<128x128xi32>
    %cst_11 = arith.constant -1.000000e+30 : f32
    %15 = vector.broadcast %cst_11 : f32 to vector<128x128xf32>
    %16 = arith.select %14, %9, %15 : vector<128x128xi1>, vector<128x128xf32>
    %cst_12 = arith.constant dense<0xFF800000> : vector<128xf32>
    %17 = vector.multi_reduction <maximumf>, %16, %cst_12 [0] : vector<128x128xf32> to vector<128xf32>
    %18 = vector.shape_cast %17 : vector<128xf32> to vector<1x128xf32>
    %19 = arith.maximumf %2, %18 : vector<1x128xf32>
    %20 = arith.subf %2, %19 : vector<1x128xf32>
    %21 = math.exp %20 : vector<1x128xf32>
    %22 = vector.broadcast %19 : vector<1x128xf32> to vector<128x128xf32>
    %23 = arith.subf %16, %22 : vector<128x128xf32>
    %24 = math.exp %23 : vector<128x128xf32>
    %25 = arith.mulf %21, %3 : vector<1x128xf32>
    %cst_13 = arith.constant dense<0.000000e+00> : vector<128xf32>
    %26 = vector.multi_reduction <add>, %24, %cst_13 [0] : vector<128x128xf32> to vector<128xf32>
    %27 = vector.shape_cast %26 : vector<128xf32> to vector<1x128xf32>
    %28 = arith.addf %25, %27 : vector<1x128xf32>
    %29 = vector.broadcast %21 : vector<1x128xf32> to vector<16x128xf32>
    %30 = arith.mulf %29, %4 : vector<16x128xf32>
    %31 = arith.truncf %24 : vector<128x128xf32> to vector<128x128xbf16>
    %cst_14 = arith.constant dense<0.000000e+00> : vector<16x128xf32>
    %32 = tpu.matmul %8, %31, %cst_14 {dimension_numbers = #tpu.dot_dimension_numbers<[1], [0], [0], [1], [0, 0, 1, 1], [], []>} : vector<16x128xbf16>, vector<128x128xbf16>, vector<16x128xf32> -> vector<16x128xf32>
    %33 = arith.addf %30, %32 : vector<16x128xf32>
    %34 = tpu.reciprocal %28 {approx = true} : vector<1x128xf32> -> vector<1x128xf32>
    %35 = vector.broadcast %34 : vector<1x128xf32> to vector<16x128xf32>
    %36 = arith.mulf %33, %35 : vector<16x128xf32>
    %c0_15 = arith.constant 0 : index
    %c0_16 = arith.constant 0 : index
    %37 = memref.load %arg6[%c0_15, %c0_16] : memref<1x1xf32, #tpu.memory_space<smem>>
    %38 = vector.broadcast %37 : f32 to vector<16x128xf32>
    %39 = arith.mulf %38, %36 : vector<16x128xf32>
    %c0_17 = arith.constant 0 : index
    %c0_18 = arith.constant 0 : index
    %c0_19 = arith.constant 0 : index
    %40 = vector.load %arg5[%c0_17, %c0_18, %c0_19] : memref<1x16x128xf32, #tpu.memory_space<vmem>>, vector<1x16x128xf32>
    %41 = vector.shape_cast %40 : vector<1x16x128xf32> to vector<16x128xf32>
    %42 = arith.addf %39, %41 : vector<16x128xf32>
    %c0_20 = arith.constant 0 : index
    %c0_21 = arith.constant 0 : index
    %c0_22 = arith.constant 0 : index
    %43 = vector.load %arg7[%c0_20, %c0_21, %c0_22] : memref<1x16x128xf32, #tpu.memory_space<vmem>>, vector<1x16x128xf32>
    %44 = vector.shape_cast %43 : vector<1x16x128xf32> to vector<16x128xf32>
    %45 = vector.shape_cast %42 : vector<16x128xf32> to vector<1x16x128xf32>
    tpu.vector_store %arg7[%c0_20, %c0_21, %c0_22], %45 {strides = array<i32>} : memref<1x16x128xf32, #tpu.memory_space<vmem>>, vector<1x16x128xf32>,
    return
  }
  func.func @transform_0(%arg0: i32, %arg1: i32) -> (i32, i32, i32) {
    %c0_i32 = arith.constant 0 : i32
    %c0_i32_0 = arith.constant 0 : i32
    return %arg0, %c0_i32, %arg1 : i32, i32, i32
  }
  func.func @transform_1(%arg0: i32, %arg1: i32) -> (i32, i32, i32) {
    %c0_i32 = arith.constant 0 : i32
    %c0_i32_0 = arith.constant 0 : i32
    %c0_i32_1 = arith.constant 0 : i32
    return %arg0, %c0_i32, %c0_i32_0 : i32, i32, i32
  }
  func.func @transform_2(%arg0: i32, %arg1: i32) -> (i32, i32, i32) {
    %c0_i32 = arith.constant 0 : i32
    %c0_i32_0 = arith.constant 0 : i32
    %c0_i32_1 = arith.constant 0 : i32
    return %arg0, %c0_i32, %c0_i32_0 : i32, i32, i32
  }
  func.func @transform_3(%arg0: i32, %arg1: i32) -> (i32, i32, i32) {
    %c0_i32 = arith.constant 0 : i32
    %c0_i32_0 = arith.constant 0 : i32
    return %arg0, %c0_i32, %arg1 : i32, i32, i32
  }
  func.func @transform_4(%arg0: i32, %arg1: i32) -> (i32, i32) {
    %c0_i32 = arith.constant 0 : i32
    %c0_i32_0 = arith.constant 0 : i32
    %c0_i32_1 = arith.constant 0 : i32
    return %c0_i32, %c0_i32_0 : i32, i32
  }
  func.func @transform_5(%arg0: i32, %arg1: i32) -> (i32, i32, i32) {
    %c0_i32 = arith.constant 0 : i32
    %c0_i32_0 = arith.constant 0 : i32
    return %arg0, %c0_i32, %arg1 : i32, i32, i32
  }
}

</mosaic_0001>

<llo_original>
// kernel: attention_block.3
$region0: #{attention_block.3}
  #allocation0 [shape = 'u32[]', space=smem, size = 0x4, offset = 0x4, fixed_abs, tag = 'smem constant byte address 0x4 - core index']
  #allocation1 [shape = 'u32[72,128]{1,0:T(1,128)}', space=vmem, size = 0x9000, scoped, tag = 'internal scratch']
  #allocation2 [shape = 'f32[1,1]{1,0:T(1,128)S(6)}', space=smem, size = 0x200, scoped, tag = 'scoped memory for attention_block.3']
  %s0 = inlined_call_operand.vmem [shape: bf16[2,8,128], index: 0, kind: input, shape index: {}]
  %s1 = inlined_call_operand.vmem [shape: bf16[2,8,128], index: 1, kind: input, shape index: {}]
  %s2 = inlined_call_operand.vmem [shape: bf16[2,16,128], index: 2, kind: input, shape index: {}]
  %s3 = inlined_call_operand.vmem [shape: f32[2,16,128], index: 3, kind: input, shape index: {}, may-alias: {3,5}]
  %s4 = inlined_call_operand.<no memory space> [shape: f32[1,1], index: 4, kind: input, shape index: {}]
  %s5 = inlined_call_operand.vmem [shape: f32[2,16,128], index: 5, kind: output, shape index: {}, may-alias: {3,5}]
  %s6 = sld [smem:[#allocation0]]
  $region53: #{attention_block.3} parent=0
    _
  %s8 = ssub.s32 1, %s6
  %s9 = scalar_select 0, %s8, %s6
  %10 = sst [smem:[#allocation2]] %s4
  loop: start=0, step=1, limit=4
  $region2: #{attention_block.3} parent=0 // loop_pre_header
    _
  $region3: #{attention_block.3} parent=0 // loop_header
    %s12 = sphi 0, %s16
    %p13 = scmp.ge.s32.totalorder %s12, 4
    %s19 = sphi 0, %s31
    %s20 = sphi 0, %s27
    %s21 = sphi 0, %s19
    %s22 = sphi 0, %s20
    %s23 = sphi 0, %s21
    %s24 = sphi 0, %s22
    %s36 = sphi 0, %s38
    %s39 = sphi 0, %s36
    %s40 = sphi 0, %s39
    %s56 = sphi 0, %s40
    %s62 = sphi 0, %s64
    %s65 = sphi 0, %s62
    %s66 = sphi 0, %s65
    %s82 = sphi 0, %s66
    %s88 = sphi 0, %s90
    %s91 = sphi 0, %s88
    %s92 = sphi 0, %s91
    %s108 = sphi 0, %s92
    %s116 = sphi 0, %s118
    %s119 = sphi 0, %s116
    %s120 = sphi 0, %s119
    %s136 = sphi 0, %s120
    %s140 = sphi 0, %s140
    %s142 = sphi 0, %s140
    %s143 = sphi 0, %s142
    %s157 = sphi 0, %s143
    %s165 = sphi 0, %s167
    %s168 = sphi 0, %s165
    %s169 = sphi 0, %s168
    %s185 = sphi 0, %s169
  $region4: #{attention_block.3} parent=0 // loop_header_branch
    %15 = sbr.rel (%p13) target = $region8
  $region5: #{attention_block.3} parent=0 // loop_body
    %s17 = ssub.s32 %s12, 1
    %s18 = ssub.s32 %s12, 2
    %s25 = sadd.s32 1, %s20
    %p26 = scmp.ge.s32.totalorder %s25, 1
    %s27 = scalar_select %p26, 0, %s25
    %s28 = sadd.s32 1, %s19
    %s29 = scalar_select %p26, %s28, %s19
    %p30 = scmp.ge.s32.totalorder %s29, 2
    %s31 = scalar_select %p30, 0, %s29
    %s32 = ssub.s32 %s19, %s31
    %s33 = ssub.s32 %s20, %s27
    %s34 = sor.u32 %s32, %s33
    %p35 = scmp.eq.s32.totalorder %s34, 0
    %s37 = sadd.s32 %s36, 1
    %s38 = scalar_select %p35, %s36, %s37
    %p41 = pneg %p35
    %p42 = scmp.eq.s32.totalorder %s12, 1
    %p43 = por %p41, %p42
    %p44 = scmp.ne.s32.totalorder %s36, %s39
    %p45 = scmp.eq.s32.totalorder %s12, 0
    %p46 = por %p44, %p45
    %p47 = scmp.ne.s32.totalorder %s36, %s39
    %p48 = scmp.eq.s32.totalorder %s17, 1
    %p49 = por %p47, %p48
    %p50 = scmp.ne.s32.totalorder %s39, %s40
    %p51 = scmp.eq.s32.totalorder %s17, 0
    %p52 = por %p50, %p51
    %p53 = scmp.ne.s32.totalorder %s39, %s40
    %p54 = scmp.eq.s32.totalorder %s18, 1
    %p55 = por %p53, %p54
    %p57 = scmp.ne.s32.totalorder %s40, %s56
    %p58 = scmp.eq.s32.totalorder %s18, 0
    %p59 = por %p57, %p58
    %s60 = ssub.s32 %s19, %s31
    %p61 = scmp.eq.s32.totalorder %s60, 0
    %s63 = sadd.s32 %s62, 1
    %s64 = scalar_select %p61, %s62, %s63
    %p67 = pneg %p61
    %p68 = scmp.eq.s32.totalorder %s12, 1
    %p69 = por %p67, %p68
    %p70 = scmp.ne.s32.totalorder %s62, %s65
    %p71 = scmp.eq.s32.totalorder %s12, 0
    %p72 = por %p70, %p71
    %p73 = scmp.ne.s32.totalorder %s62, %s65
    %p74 = scmp.eq.s32.totalorder %s17, 1
    %p75 = por %p73, %p74
    %p76 = scmp.ne.s32.totalorder %s65, %s66
    %p77 = scmp.eq.s32.totalorder %s17, 0
    %p78 = por %p76, %p77
    %p79 = scmp.ne.s32.totalorder %s65, %s66
    %p80 = scmp.eq.s32.totalorder %s18, 1
    %p81 = por %p79, %p80
    %p83 = scmp.ne.s32.totalorder %s66, %s82
    %p84 = scmp.eq.s32.totalorder %s18, 0
    %p85 = por %p83, %p84
    %s86 = ssub.s32 %s19, %s31
    %p87 = scmp.eq.s32.totalorder %s86, 0
    %s89 = sadd.s32 %s88, 1
    %s90 = scalar_select %p87, %s88, %s89
    %p93 = pneg %p87
    %p94 = scmp.eq.s32.totalorder %s12, 1
    %p95 = por %p93, %p94
    %p96 = scmp.ne.s32.totalorder %s88, %s91
    %p97 = scmp.eq.s32.totalorder %s12, 0
    %p98 = por %p96, %p97
    %p99 = scmp.ne.s32.totalorder %s88, %s91
    %p100 = scmp.eq.s32.totalorder %s17, 1
    %p101 = por %p99, %p100
    %p102 = scmp.ne.s32.totalorder %s91, %s92
    %p103 = scmp.eq.s32.totalorder %s17, 0
    %p104 = por %p102, %p103
    %p105 = scmp.ne.s32.totalorder %s91, %s92
    %p106 = scmp.eq.s32.totalorder %s18, 1
    %p107 = por %p105, %p106
    %p109 = scmp.ne.s32.totalorder %s92, %s108
    %p110 = scmp.eq.s32.totalorder %s18, 0
    %p111 = por %p109, %p110
    %s112 = ssub.s32 %s19, %s31
    %s113 = ssub.s32 %s20, %s27
    %s114 = sor.u32 %s112, %s113
    %p115 = scmp.eq.s32.totalorder %s114, 0
    %s117 = sadd.s32 %s116, 1
    %s118 = scalar_select %p115, %s116, %s117
    %p121 = pneg %p115
    %p122 = scmp.eq.s32.totalorder %s12, 1
    %p123 = por %p121, %p122
    %p124 = scmp.ne.s32.totalorder %s116, %s119
    %p125 = scmp.eq.s32.totalorder %s12, 0
    %p126 = por %p124, %p125
    %p127 = scmp.ne.s32.totalorder %s116, %s119
    %p128 = scmp.eq.s32.totalorder %s17, 1
    %p129 = por %p127, %p128
    %p130 = scmp.ne.s32.totalorder %s119, %s120
    %p131 = scmp.eq.s32.totalorder %s17, 0
    %p132 = por %p130, %p131
    %p133 = scmp.ne.s32.totalorder %s119, %s120
    %p134 = scmp.eq.s32.totalorder %s18, 1
    %p135 = por %p133, %p134
    %p137 = scmp.ne.s32.totalorder %s120, %s136
    %p138 = scmp.eq.s32.totalorder %s18, 0
    %p139 = por %p137, %p138
    %s141 = sadd.s32 %s140, 1
    %p144 = scmp.eq.s32.totalorder %s12, 1
    %p145 = scmp.ne.s32.totalorder %s140, %s142
    %p146 = scmp.eq.s32.totalorder %s12, 0
    %p147 = por %p145, %p146
    %p148 = scmp.ne.s32.totalorder %s140, %s142
    %p149 = scmp.eq.s32.totalorder %s17, 1
    %p150 = por %p148, %p149
    %p151 = scmp.ne.s32.totalorder %s142, %s143
    %p152 = scmp.eq.s32.totalorder %s17, 0
    %p153 = por %p151, %p152
    %p154 = scmp.ne.s32.totalorder %s142, %s143
    %p155 = scmp.eq.s32.totalorder %s18, 1
    %p156 = por %p154, %p155
    %p158 = scmp.ne.s32.totalorder %s143, %s157
    %p159 = scmp.eq.s32.totalorder %s18, 0
    %p160 = por %p158, %p159
    %s161 = ssub.s32 %s19, %s31
    %s162 = ssub.s32 %s20, %s27
    %s163 = sor.u32 %s161, %s162
    %p164 = scmp.eq.s32.totalorder %s163, 0
    %s166 = sadd.s32 %s165, 1
    %s167 = scalar_select %p164, %s165, %s166
    %p170 = pneg %p164
    %p171 = scmp.eq.s32.totalorder %s12, 1
    %p172 = por %p170, %p171
    %p173 = scmp.ne.s32.totalorder %s165, %s168
    %p174 = scmp.eq.s32.totalorder %s12, 0
    %p175 = por %p173, %p174
    %p176 = scmp.ne.s32.totalorder %s165, %s168
    %p177 = scmp.eq.s32.totalorder %s17, 1
    %p178 = por %p176, %p177
    %p179 = scmp.ne.s32.totalorder %s168, %s169
    %p180 = scmp.eq.s32.totalorder %s17, 0
    %p181 = por %p179, %p180
    %p182 = scmp.ne.s32.totalorder %s168, %s169
    %p183 = scmp.eq.s32.totalorder %s18, 1
    %p184 = por %p182, %p183
    %p186 = scmp.ne.s32.totalorder %s169, %s185
    %p187 = scmp.eq.s32.totalorder %s18, 0
    %p188 = por %p186, %p187
    %p189 = scmp.le.s32.totalorder 1, %s12
    %p190 = scmp.lt.s32.totalorder %s12, 3
    %p191 = pnand %p189, %p190
    %p192 = pneg %p191
    // Predicated region
    $region9: #{attention_block.3} parent=5 // pred_check
      _
    $region10: #{attention_block.3} parent=5 // pred_check_branch
      %194 = sbr.rel (%p191) target = $region12
    $region11: #{attention_block.3} parent=5 // pred_region
      %s195 = ssub.s32 %s12, 1
      // Predicated region
      $region13: #{attention_block.3} parent=11 // pred_check
        %p196 = pneg %p153
      $region14: #{attention_block.3} parent=11 // pred_check_branch
        %198 = sbr.rel (%p196) target = $region16
      $region15: #{attention_block.3} parent=11 // pred_region
        _
      $region16: #{attention_block.3} parent=11 // pred_fallthru
        _
    $region12: #{attention_block.3} parent=5 // pred_fallthru
      _
    %p199 = scmp.lt.s32.totalorder %s12, 2
    // Predicated region
    $region17: #{attention_block.3} parent=5 // pred_check
      %p200 = pneg %p199
    $region18: #{attention_block.3} parent=5 // pred_check_branch
      %202 = sbr.rel (%p200) target = $region20
    $region19: #{attention_block.3} parent=5 // pred_region
      // Predicated region
      $region21: #{attention_block.3} parent=19 // pred_check
        %p203 = pneg %p46
      $region22: #{attention_block.3} parent=19 // pred_check_branch
        %205 = sbr.rel (%p203) target = $region24
      $region23: #{attention_block.3} parent=19 // pred_region
        %p206 = scmp.lt.s32.totalorder %s19, 1
        %s207 = scalar_select %p206, %s19, 1
        %p208 = scmp.lt.s32.totalorder %s20, 0
        %s209 = scalar_select %p208, %s20, 0
        %s210 = sadd.s32 %s209, %s207
        %s211 = smul.addr %s210, 4
        %s212 = scalar_lea.vmem %s0, %s211
      $region24: #{attention_block.3} parent=19 // pred_fallthru
        _
      // Predicated region
      $region25: #{attention_block.3} parent=19 // pred_check
        %p213 = pneg %p72
      $region26: #{attention_block.3} parent=19 // pred_check_branch
        %215 = sbr.rel (%p213) target = $region28
      $region27: #{attention_block.3} parent=19 // pred_region
        %p216 = scmp.lt.s32.totalorder %s19, 1
        %s217 = scalar_select %p216, %s19, 1
        %s218 = smul.addr %s217, 4
        %s219 = scalar_lea.vmem %s1, %s218
      $region28: #{attention_block.3} parent=19 // pred_fallthru
        _
      // Predicated region
      $region29: #{attention_block.3} parent=19 // pred_check
        %p220 = pneg %p98
      $region30: #{attention_block.3} parent=19 // pred_check_branch
        %222 = sbr.rel (%p220) target = $region32
      $region31: #{attention_block.3} parent=19 // pred_region
        %p223 = scmp.lt.s32.totalorder %s19, 1
        %s224 = scalar_select %p223, %s19, 1
        %s225 = smul.addr %s224, 2
        %s226 = smul.addr %s225, 4
        %s227 = scalar_lea.vmem %s2, %s226
      $region32: #{attention_block.3} parent=19 // pred_fallthru
        _
      // Predicated region
      $region33: #{attention_block.3} parent=19 // pred_check
        %p228 = pneg %p126
      $region34: #{attention_block.3} parent=19 // pred_check_branch
        %230 = sbr.rel (%p228) target = $region36
      $region35: #{attention_block.3} parent=19 // pred_region
        %p231 = scmp.lt.s32.totalorder %s19, 1
        %s232 = scalar_select %p231, %s19, 1
        %p233 = scmp.lt.s32.totalorder %s20, 0
        %s234 = scalar_select %p233, %s20, 0
        %s235 = smul.addr %s232, 2
        %s236 = sadd.s32 %s234, %s235
        %s237 = smul.addr %s236, 8
        %s238 = scalar_lea.vmem %s3, %s237
      $region36: #{attention_block.3} parent=19 // pred_fallthru
        _
    $region20: #{attention_block.3} parent=5 // pred_fallthru
      _
    %p239 = scmp.le.s32.totalorder 1, %s12
    %p240 = scmp.lt.s32.totalorder %s12, 3
    %p241 = pnand %p239, %p240
    %p242 = pneg %p241
    // Predicated region
    $region37: #{attention_block.3} parent=5 // pred_check
      _
    $region38: #{attention_block.3} parent=5 // pred_check_branch
      %244 = sbr.rel (%p241) target = $region40
    $region39: #{attention_block.3} parent=5 // pred_region
      %s245 = ssub.s32 %s12, 1
      %p246 = scmp.lt.s32.totalorder %s21, 1
      %s247 = scalar_select %p246, %s21, 1
      %p248 = scmp.lt.s32.totalorder %s22, 0
      %s249 = scalar_select %p248, %s22, 0
      %s250 = sadd.s32 %s249, %s247
      %s251 = smul.addr %s250, 4
      %s252 = scalar_lea.vmem %s0, %s251
      %p253 = pneg %p52
      %p254 = pneg %p49
      %p255 = scmp.lt.s32.totalorder %s21, 1
      %s256 = scalar_select %p255, %s21, 1
      %s257 = smul.addr %s256, 4
      %s258 = scalar_lea.vmem %s1, %s257
      %p259 = pneg %p78
      %p260 = pneg %p75
      %p261 = scmp.lt.s32.totalorder %s21, 1
      %s262 = scalar_select %p261, %s21, 1
      %s263 = smul.addr %s262, 2
      %s264 = smul.addr %s263, 4
      %s265 = scalar_lea.vmem %s2, %s264
      %p266 = pneg %p104
      %p267 = pneg %p101
      %p268 = scmp.lt.s32.totalorder %s21, 1
      %s269 = scalar_select %p268, %s21, 1
      %p270 = scmp.lt.s32.totalorder %s22, 0
      %s271 = scalar_select %p270, %s22, 0
      %s272 = smul.addr %s269, 2
      %s273 = sadd.s32 %s271, %s272
      %s274 = smul.addr %s273, 8
      %s275 = scalar_lea.vmem %s3, %s274
      %p276 = pneg %p132
      %p277 = pneg %p129
      %p278 = pneg %p153
      %p279 = pneg %p150
      %p280 = pneg %p181
      %p281 = pneg %p178
      %p282 = scmp.lt.s32.totalorder %s21, 1
      %s283 = scalar_select %p282, %s21, 1
      %p284 = scmp.lt.s32.totalorder %s22, 0
      %s285 = scalar_select %p284, %s22, 0
      %s286 = smul.addr %s283, 2
      %s287 = sadd.s32 %s285, %s286
      %s288 = smul.addr %s287, 8
      %s289 = scalar_lea.vmem %s5, %s288
      %p290 = scmp.lt.s32.totalorder %s21, 1
      %s291 = scalar_select %p290, %s21, 1
      %p292 = scmp.lt.s32.totalorder %s22, 0
      %s293 = scalar_select %p292, %s22, 0
      %s294 = sadd.s32 %s293, %s291
      %s295 = smul.addr %s294, 4
      %s296 = scalar_lea.vmem %s0, %s295
      %p297 = scmp.lt.s32.totalorder %s21, 1
      %s298 = scalar_select %p297, %s21, 1
      %s299 = smul.addr %s298, 4
      %s300 = scalar_lea.vmem %s1, %s299
      %p301 = scmp.lt.s32.totalorder %s21, 1
      %s302 = scalar_select %p301, %s21, 1
      %s303 = smul.addr %s302, 2
      %s304 = smul.addr %s303, 4
      %s305 = scalar_lea.vmem %s2, %s304
      %p306 = scmp.lt.s32.totalorder %s21, 1
      %s307 = scalar_select %p306, %s21, 1
      %p308 = scmp.lt.s32.totalorder %s22, 0
      %s309 = scalar_select %p308, %s22, 0
      %s310 = smul.addr %s307, 2
      %s311 = sadd.s32 %s309, %s310
      %s312 = smul.addr %s311, 8
      %s313 = scalar_lea.vmem %s3, %s312
      %p314 = scmp.lt.s32.totalorder %s21, 1
      %s315 = scalar_select %p314, %s21, 1
      %p316 = scmp.lt.s32.totalorder %s22, 0
      %s317 = scalar_select %p316, %s22, 0
      %s318 = smul.addr %s315, 2
      %s319 = sadd.s32 %s317, %s318
      %s320 = smul.addr %s319, 8
      %s321 = scalar_lea.vmem %s5, %s320
      %v323 = vld [vmem:[%s296] sm:$0xf]
      %v324 = vld [vmem:[%s300] sm:$0xf]
      %v325 = vld [vmem:[%s305] sm:$0xf]
      %v326 = vld [vmem:[%s305 + $0x4] sm:$0xf]
      %327 = vxpose.xlu0.c.b16.start [1/8] %v324, 128
      %328 = vxpose.xlu0.c.b16.cont [2/8] 0, 128
      %329 = vxpose.xlu0.c.b16.cont [3/8] 0, 128
      %330 = vxpose.xlu0.c.b16.cont [4/8] 0, 128
      %331 = vxpose.xlu0.c.b16.cont [5/8] 0, 128
      %332 = vxpose.xlu0.c.b16.cont [6/8] 0, 128
      %333 = vxpose.xlu0.c.b16.cont [7/8] 0, 128
      %334 = vxpose.xlu0.c.b16.end [8/8] 0, 128
      %v335 = vpop.trf.xlu0
      %v336 = vpop.trf.xlu0
      %v337 = vpop.trf.xlu0
      %v338 = vpop.trf.xlu0
      %v339 = vpop.trf.xlu0
      %v340 = vpop.trf.xlu0
      %v341 = vpop.trf.xlu0
      %v342 = vpop.trf.xlu0
      %vm343 = vcmask 64512
      %v345 = vsel %vm343, %v335, 0
      %v348 = vsel %vm343, %v336, 0
      %v351 = vsel %vm343, %v337, 0
      %v354 = vsel %vm343, %v338, 0
      %v357 = vsel %vm343, %v339, 0
      %v360 = vsel %vm343, %v340, 0
      %v363 = vsel %vm343, %v341, 0
      %v366 = vsel %vm343, %v342, 0
      %vm368 = vcmask 1043456
      %v370 = vsel %vm368, %v323, 0
      %372 = vmatpush.bf16.msra.mxu0 0
      %373 = vmatpush.bf16.msra.mxu0 0
      %374 = vmatpush.bf16.msra.mxu0 0
      %375 = vmatpush.bf16.msra.mxu0 0
      %376 = vmatpush.bf16.msra.mxu0 0
      %377 = vmatpush.bf16.msra.mxu0 0
      %378 = vmatpush.bf16.msra.mxu0 0
      %379 = vmatpush.bf16.msra.mxu0 %v370
      %380 = vmatmul.bf16.gmra.mxu0 %v345
      %v381 = vpop.f32.mrf.mxu0
      %v382 = vadd.f32 0.0, %v381
      %v383 = vpop.f32.mrf.mxu0
      %v384 = vadd.f32 0.0, %v383
      %385 = vmatmul.bf16.gmra.mxu0 %v348
      %v386 = vpop.f32.mrf.mxu0
      %v387 = vadd.f32 0.0, %v386
      %v388 = vpop.f32.mrf.mxu0
      %v389 = vadd.f32 0.0, %v388
      %390 = vmatmul.bf16.gmra.mxu0 %v351
      %v391 = vpop.f32.mrf.mxu0
      %v392 = vadd.f32 0.0, %v391
      %v393 = vpop.f32.mrf.mxu0
      %v394 = vadd.f32 0.0, %v393
      %395 = vmatmul.bf16.gmra.mxu0 %v354
      %v396 = vpop.f32.mrf.mxu0
      %v397 = vadd.f32 0.0, %v396
      %v398 = vpop.f32.mrf.mxu0
      %v399 = vadd.f32 0.0, %v398
      %400 = vmatmul.bf16.gmra.mxu0 %v357
      %v401 = vpop.f32.mrf.mxu0
      %v402 = vadd.f32 0.0, %v401
      %v403 = vpop.f32.mrf.mxu0
      %v404 = vadd.f32 0.0, %v403
      %405 = vmatmul.bf16.gmra.mxu0 %v360
      %v406 = vpop.f32.mrf.mxu0
      %v407 = vadd.f32 0.0, %v406
      %v408 = vpop.f32.mrf.mxu0
      %v409 = vadd.f32 0.0, %v408
      %410 = vmatmul.bf16.gmra.mxu0 %v363
      %v411 = vpop.f32.mrf.mxu0
      %v412 = vadd.f32 0.0, %v411
      %v413 = vpop.f32.mrf.mxu0
      %v414 = vadd.f32 0.0, %v413
      %415 = vmatmul.bf16.gmra.mxu0 %v366
      %v416 = vpop.f32.mrf.mxu0
      %v417 = vadd.f32 0.0, %v416
      %v418 = vpop.f32.mrf.mxu0
      %v419 = vadd.f32 0.0, %v418
      %420 = vdwg.mxu0
      %v421 = vlaneseq
      %v422 = vshrl.u32 %v421, 7
      %v423 = vadd.s32 %v422, 8
      %v424 = vadd.s32 %v422, 16
      %v425 = vadd.s32 %v422, 24
      %v426 = vadd.s32 %v422, 32
      %v427 = vadd.s32 %v422, 40
      %v428 = vadd.s32 %v422, 48
      %v429 = vadd.s32 %v422, 56
      %v430 = vadd.s32 %v422, 64
      %v431 = vadd.s32 %v422, 72
      %v432 = vadd.s32 %v422, 80
      %v433 = vadd.s32 %v422, 88
      %v434 = vadd.s32 %v422, 96
      %v435 = vadd.s32 %v422, 104
      %v436 = vadd.s32 %v422, 112
      %v437 = vadd.s32 %v422, 120
      %vm438 = vcmp.lt.s32.totalorder %v422, 64
      %vm439 = vcmp.lt.s32.totalorder %v423, 64
      %vm440 = vcmp.lt.s32.totalorder %v424, 64
      %vm441 = vcmp.lt.s32.totalorder %v425, 64
      %vm442 = vcmp.lt.s32.totalorder %v426, 64
      %vm443 = vcmp.lt.s32.totalorder %v427, 64
      %vm444 = vcmp.lt.s32.totalorder %v428, 64
      %vm445 = vcmp.lt.s32.totalorder %v429, 64
      %vm446 = vcmp.lt.s32.totalorder %v430, 64
      %vm447 = vcmp.lt.s32.totalorder %v431, 64
      %vm448 = vcmp.lt.s32.totalorder %v432, 64
      %vm449 = vcmp.lt.s32.totalorder %v433, 64
      %vm450 = vcmp.lt.s32.totalorder %v434, 64
      %vm451 = vcmp.lt.s32.totalorder %v435, 64
      %vm452 = vcmp.lt.s32.totalorder %v436, 64
      %vm453 = vcmp.lt.s32.totalorder %v437, 64
      %v454 = vsel %vm438, %v382, -1e+30
      %v455 = vsel %vm439, %v384, -1e+30
      %v456 = vsel %vm440, %v387, -1e+30
      %v457 = vsel %vm441, %v389, -1e+30
      %v458 = vsel %vm442, %v392, -1e+30
      %v459 = vsel %vm443, %v394, -1e+30
      %v460 = vsel %vm444, %v397, -1e+30
      %v461 = vsel %vm445, %v399, -1e+30
      %v462 = vsel %vm446, %v402, -1e+30
      %v463 = vsel %vm447, %v404, -1e+30
      %v464 = vsel %vm448, %v407, -1e+30
      %v465 = vsel %vm449, %v409, -1e+30
      %v466 = vsel %vm450, %v412, -1e+30
      %v467 = vsel %vm451, %v414, -1e+30
      %v468 = vsel %vm452, %v417, -1e+30
      %v469 = vsel %vm453, %v419, -1e+30
      %v470 = vmax.f32 %v454, %v458
      %v471 = vmax.f32 %v455, %v459
      %v472 = vmax.f32 %v456, %v460
      %v473 = vmax.f32 %v457, %v461
      %v474 = vmax.f32 %v470, %v462
      %v475 = vmax.f32 %v471, %v463
      %v476 = vmax.f32 %v472, %v464
      %v477 = vmax.f32 %v473, %v465
      %v478 = vmax.f32 %v474, %v466
      %v479 = vmax.f32 %v475, %v467
      %v480 = vmax.f32 %v476, %v468
      %v481 = vmax.f32 %v477, %v469
      %v482 = vmax.f32 %v478, %v479
      %v483 = vmax.f32 %v480, %v481
      %v484 = vmax.f32 %v482, %v483
      %v485 = vrot.slane %v484, 4
      %v486 = vmax.f32 %v484, %v485
      %v487 = vrot.slane %v486, 2
      %v488 = vmax.f32 %v486, %v487
      %v489 = vrot.slane %v488, 1
      %v490 = vmax.f32 %v488, %v489
      %v491 = vsub.f32 -inf, %v490
      %v492 = vmul.f32 %v491, 1.442695
      %v493 = vpow.pop %v492
      %v494 = vsub.f32 %v454, %v490
      %v495 = vsub.f32 %v455, %v490
      %v496 = vsub.f32 %v456, %v490
      %v497 = vsub.f32 %v457, %v490
      %v498 = vsub.f32 %v458, %v490
      %v499 = vsub.f32 %v459, %v490
      %v500 = vsub.f32 %v460, %v490
      %v501 = vsub.f32 %v461, %v490
      %v502 = vsub.f32 %v462, %v490
      %v503 = vsub.f32 %v463, %v490
      %v504 = vsub.f32 %v464, %v490
      %v505 = vsub.f32 %v465, %v490
      %v506 = vsub.f32 %v466, %v490
      %v507 = vsub.f32 %v467, %v490
      %v508 = vsub.f32 %v468, %v490
      %v509 = vsub.f32 %v469, %v490
      %v510 = vmul.f32 %v494, 1.442695
      %v511 = vpow.pop %v510
      %v512 = vmul.f32 %v495, 1.442695
      %v513 = vpow.pop %v512
      %v514 = vmul.f32 %v496, 1.442695
      %v515 = vpow.pop %v514
      %v516 = vmul.f32 %v497, 1.442695
      %v517 = vpow.pop %v516
      %v518 = vmul.f32 %v498, 1.442695
      %v519 = vpow.pop %v518
      %v520 = vmul.f32 %v499, 1.442695
      %v521 = vpow.pop %v520
      %v522 = vmul.f32 %v500, 1.442695
      %v523 = vpow.pop %v522
      %v524 = vmul.f32 %v501, 1.442695
      %v525 = vpow.pop %v524
      %v526 = vmul.f32 %v502, 1.442695
      %v527 = vpow.pop %v526
      %v528 = vmul.f32 %v503, 1.442695
      %v529 = vpow.pop %v528
      %v530 = vmul.f32 %v504, 1.442695
      %v531 = vpow.pop %v530
      %v532 = vmul.f32 %v505, 1.442695
      %v533 = vpow.pop %v532
      %v534 = vmul.f32 %v506, 1.442695
      %v535 = vpow.pop %v534
      %v536 = vmul.f32 %v507, 1.442695
      %v537 = vpow.pop %v536
      %v538 = vmul.f32 %v508, 1.442695
      %v539 = vpow.pop %v538
      %v540 = vmul.f32 %v509, 1.442695
      %v541 = vpow.pop %v540
      %v542 = vmul.f32 %v493, 0.0
      %v543 = vadd.f32 %v511, %v513
      %v544 = vadd.f32 %v543, %v515
      %v545 = vadd.f32 %v544, %v517
      %v546 = vadd.f32 %v545, %v519
      %v547 = vadd.f32 %v546, %v521
      %v548 = vadd.f32 %v547, %v523
      %v549 = vadd.f32 %v548, %v525
      %v550 = vadd.f32 %v549, %v527
      %v551 = vadd.f32 %v550, %v529
      %v552 = vadd.f32 %v551, %v531
      %v553 = vadd.f32 %v552, %v533
      %v554 = vadd.f32 %v553, %v535
      %v555 = vadd.f32 %v554, %v537
      %v556 = vadd.f32 %v555, %v539
      %v557 = vadd.f32 %v556, %v541
      %v558 = vrot.slane %v557, 4
      %v559 = vadd.f32 %v557, %v558
      %v560 = vrot.slane %v559, 2
      %v561 = vadd.f32 %v559, %v560
      %v562 = vrot.slane %v561, 1
      %v563 = vadd.f32 %v561, %v562
      %v564 = vadd.f32 %v542, %v563
      %v565 = vpack.c.bf16 %v513, %v511
      %v566 = vpack.c.bf16 %v517, %v515
      %v567 = vpack.c.bf16 %v521, %v519
      %v568 = vpack.c.bf16 %v525, %v523
      %v569 = vpack.c.bf16 %v529, %v527
      %v570 = vpack.c.bf16 %v533, %v531
      %v571 = vpack.c.bf16 %v537, %v535
      %v572 = vpack.c.bf16 %v541, %v539
      %v575 = vunpack.c.l.b16 %v325
      %v576 = vunpack.c.l.b16 %v326
      %v577 = vpack.c.b16 %v576, %v575
      %579 = vmatpush.bf16.msra.mxu0 %v572
      %580 = vmatpush.bf16.msra.mxu0 %v571
      %581 = vmatpush.bf16.msra.mxu0 %v570
      %582 = vmatpush.bf16.msra.mxu0 %v569
      %583 = vmatpush.bf16.msra.mxu0 %v568
      %584 = vmatpush.bf16.msra.mxu0 %v567
      %585 = vmatpush.bf16.msra.mxu0 %v566
      %586 = vmatpush.bf16.msra.mxu0 %v565
      %587 = vmatmul.bf16.gmra.mxu0 %v577
      %v588 = vpop.f32.mrf.mxu0
      %v589 = vadd.f32 0.0, %v588
      %v590 = vpop.f32.mrf.mxu0
      %v591 = vadd.f32 0.0, %v590
      %592 = vdwg.mxu0
      %v593 = vadd.f32 %v542, %v589
      %v594 = vadd.f32 %v542, %v591
      %v595 = vrcp.pop %v564
      %v596 = vmul.f32 %v593, %v595
      %v597 = vmul.f32 %v594, %v595
      %s598 = sld [smem:[#allocation2]]
      %v599 = vstv %s598
      %v600 = vmul.f32 %v599, %v596
      %v601 = vmul.f32 %v599, %v597
      %v602 = vld [vmem:[%s313] sm:$0xff]
      %v603 = vld [vmem:[%s313 + $0x8] sm:$0xff]
      %v604 = vadd.f32 %v600, %v602
      %v605 = vadd.f32 %v601, %v603
      %606 = vst [vmem:[%s321] sm:$0xff] %v604
      %607 = vst [vmem:[%s321 + $0x8] sm:$0xff] %v605
      %p608 = scmp.lt.s32.totalorder %s21, 1
      %s609 = scalar_select %p608, %s21, 1
      %p610 = scmp.lt.s32.totalorder %s22, 0
      %s611 = scalar_select %p610, %s22, 0
      %s612 = smul.addr %s609, 2
      %s613 = sadd.s32 %s611, %s612
      %s614 = smul.addr %s613, 8
      %s615 = scalar_lea.vmem %s5, %s614
      // Predicated region
      $region41: #{attention_block.3} parent=39 // pred_check
        %p616 = pneg %p178
      $region42: #{attention_block.3} parent=39 // pred_check_branch
        %618 = sbr.rel (%p616) target = $region44
      $region43: #{attention_block.3} parent=39 // pred_region
        _
      $region44: #{attention_block.3} parent=39 // pred_fallthru
        _
    $region40: #{attention_block.3} parent=5 // pred_fallthru
      _
    %p619 = scmp.le.s32.totalorder 2, %s12
    // Predicated region
    $region45: #{attention_block.3} parent=5 // pred_check
      %p620 = pneg %p619
    $region46: #{attention_block.3} parent=5 // pred_check_branch
      %622 = sbr.rel (%p620) target = $region48
    $region47: #{attention_block.3} parent=5 // pred_region
      %s623 = ssub.s32 %s12, 2
      // Predicated region
      $region49: #{attention_block.3} parent=47 // pred_check
        %p624 = pneg %p184
      $region50: #{attention_block.3} parent=47 // pred_check_branch
        %626 = sbr.rel (%p624) target = $region52
      $region51: #{attention_block.3} parent=47 // pred_region
        %p627 = scmp.lt.s32.totalorder %s23, 1
        %s628 = scalar_select %p627, %s23, 1
        %p629 = scmp.lt.s32.totalorder %s24, 0
        %s630 = scalar_select %p629, %s24, 0
        %s631 = smul.addr %s628, 2
        %s632 = sadd.s32 %s630, %s631
        %s633 = smul.addr %s632, 8
        %s634 = scalar_lea.vmem %s5, %s633
      $region52: #{attention_block.3} parent=47 // pred_fallthru
        _
    $region48: #{attention_block.3} parent=5 // pred_fallthru
      _
  $region6: #{attention_block.3} parent=0 // loop_footer
    %s16 = sadd.s32 1, %s12
  $region7: #{attention_block.3} parent=0 // loop_footer_branch
    %11 = sbr.rel target = $region3
  $region8: #{attention_block.3} parent=0 // loop_exit
    _

// kernel: attention_block.2
$region0: #{attention_block.2}
  #allocation0 [shape = 'u32[]', space=smem, size = 0x4, offset = 0x4, fixed_abs, tag = 'smem constant byte address 0x4 - core index']
  #allocation1 [shape = 'u32[72,128]{1,0:T(1,128)}', space=vmem, size = 0x9000, scoped, tag = 'internal scratch']
  %s0 = inlined_call_operand.vmem [shape: bf16[2,16,128], index: 0, kind: input, shape index: {}]
  %s1 = inlined_call_operand.vmem [shape: bf16[32,16], index: 1, kind: input, shape index: {}]
  %s2 = inlined_call_operand.vmem [shape: f32[32,1], index: 2, kind: input, shape index: {}]
  %s3 = inlined_call_operand.vmem [shape: bf16[2,8,128], index: 3, kind: output, shape index: {0}]
  %s4 = inlined_call_operand.vmem [shape: bf16[2,8,128], index: 4, kind: output, shape index: {1}]
  %s5 = inlined_call_operand.vmem [shape: bf16[2,16,128], index: 5, kind: output, shape index: {2}]
  %6 = xla_tuple %s3, %s4, %s5
  %s7 = sld [smem:[#allocation0]]
  $region61: #{attention_block.2} parent=0
    _
  %s9 = ssub.s32 1, %s7
  %s10 = scalar_select 0, %s9, %s7
  loop: start=0, step=1, limit=4
  $region2: #{attention_block.2} parent=0 // loop_pre_header
    _
  $region3: #{attention_block.2} parent=0 // loop_header
    %s12 = sphi 0, %s16
    %p13 = scmp.ge.s32.totalorder %s12, 4
    %s19 = sphi 0, %s31
    %s20 = sphi 0, %s27
    %s21 = sphi 0, %s19
    %s22 = sphi 0, %s20
    %s23 = sphi 0, %s21
    %s24 = sphi 0, %s22
    %s36 = sphi 0, %s38
    %s39 = sphi 0, %s36
    %s40 = sphi 0, %s39
    %s56 = sphi 0, %s40
    %s60 = sphi 0, %s60
    %s62 = sphi 0, %s60
    %s63 = sphi 0, %s62
    %s77 = sphi 0, %s63
    %s81 = sphi 0, %s81
    %s83 = sphi 0, %s81
    %s84 = sphi 0, %s83
    %s98 = sphi 0, %s84
    %s106 = sphi 0, %s108
    %s109 = sphi 0, %s106
    %s110 = sphi 0, %s109
    %s126 = sphi 0, %s110
    %s134 = sphi 0, %s136
    %s137 = sphi 0, %s134
    %s138 = sphi 0, %s137
    %s154 = sphi 0, %s138
    %s162 = sphi 0, %s164
    %s165 = sphi 0, %s162
    %s166 = sphi 0, %s165
    %s182 = sphi 0, %s166
  $region4: #{attention_block.2} parent=0 // loop_header_branch
    %15 = sbr.rel (%p13) target = $region8
  $region5: #{attention_block.2} parent=0 // loop_body
    %s17 = ssub.s32 %s12, 1
    %s18 = ssub.s32 %s12, 2
    %s25 = sadd.s32 1, %s20
    %p26 = scmp.ge.s32.totalorder %s25, 1
    %s27 = scalar_select %p26, 0, %s25
    %s28 = sadd.s32 1, %s19
    %s29 = scalar_select %p26, %s28, %s19
    %p30 = scmp.ge.s32.totalorder %s29, 2
    %s31 = scalar_select %p30, 0, %s29
    %s32 = ssub.s32 %s19, %s31
    %s33 = ssub.s32 %s20, %s27
    %s34 = sor.u32 %s32, %s33
    %p35 = scmp.eq.s32.totalorder %s34, 0
    %s37 = sadd.s32 %s36, 1
    %s38 = scalar_select %p35, %s36, %s37
    %p41 = pneg %p35
    %p42 = scmp.eq.s32.totalorder %s12, 1
    %p43 = por %p41, %p42
    %p44 = scmp.ne.s32.totalorder %s36, %s39
    %p45 = scmp.eq.s32.totalorder %s12, 0
    %p46 = por %p44, %p45
    %p47 = scmp.ne.s32.totalorder %s36, %s39
    %p48 = scmp.eq.s32.totalorder %s17, 1
    %p49 = por %p47, %p48
    %p50 = scmp.ne.s32.totalorder %s39, %s40
    %p51 = scmp.eq.s32.totalorder %s17, 0
    %p52 = por %p50, %p51
    %p53 = scmp.ne.s32.totalorder %s39, %s40
    %p54 = scmp.eq.s32.totalorder %s18, 1
    %p55 = por %p53, %p54
    %p57 = scmp.ne.s32.totalorder %s40, %s56
    %p58 = scmp.eq.s32.totalorder %s18, 0
    %p59 = por %p57, %p58
    %s61 = sadd.s32 %s60, 1
    %p64 = scmp.eq.s32.totalorder %s12, 1
    %p65 = scmp.ne.s32.totalorder %s60, %s62
    %p66 = scmp.eq.s32.totalorder %s12, 0
    %p67 = por %p65, %p66
    %p68 = scmp.ne.s32.totalorder %s60, %s62
    %p69 = scmp.eq.s32.totalorder %s17, 1
    %p70 = por %p68, %p69
    %p71 = scmp.ne.s32.totalorder %s62, %s63
    %p72 = scmp.eq.s32.totalorder %s17, 0
    %p73 = por %p71, %p72
    %p74 = scmp.ne.s32.totalorder %s62, %s63
    %p75 = scmp.eq.s32.totalorder %s18, 1
    %p76 = por %p74, %p75
    %p78 = scmp.ne.s32.totalorder %s63, %s77
    %p79 = scmp.eq.s32.totalorder %s18, 0
    %p80 = por %p78, %p79
    %s82 = sadd.s32 %s81, 1
    %p85 = scmp.eq.s32.totalorder %s12, 1
    %p86 = scmp.ne.s32.totalorder %s81, %s83
    %p87 = scmp.eq.s32.totalorder %s12, 0
    %p88 = por %p86, %p87
    %p89 = scmp.ne.s32.totalorder %s81, %s83
    %p90 = scmp.eq.s32.totalorder %s17, 1
    %p91 = por %p89, %p90
    %p92 = scmp.ne.s32.totalorder %s83, %s84
    %p93 = scmp.eq.s32.totalorder %s17, 0
    %p94 = por %p92, %p93
    %p95 = scmp.ne.s32.totalorder %s83, %s84
    %p96 = scmp.eq.s32.totalorder %s18, 1
    %p97 = por %p95, %p96
    %p99 = scmp.ne.s32.totalorder %s84, %s98
    %p100 = scmp.eq.s32.totalorder %s18, 0
    %p101 = por %p99, %p100
    %s102 = ssub.s32 %s19, %s31
    %s103 = ssub.s32 %s20, %s27
    %s104 = sor.u32 %s102, %s103
    %p105 = scmp.eq.s32.totalorder %s104, 0
    %s107 = sadd.s32 %s106, 1
    %s108 = scalar_select %p105, %s106, %s107
    %p111 = pneg %p105
    %p112 = scmp.eq.s32.totalorder %s12, 1
    %p113 = por %p111, %p112
    %p114 = scmp.ne.s32.totalorder %s106, %s109
    %p115 = scmp.eq.s32.totalorder %s12, 0
    %p116 = por %p114, %p115
    %p117 = scmp.ne.s32.totalorder %s106, %s109
    %p118 = scmp.eq.s32.totalorder %s17, 1
    %p119 = por %p117, %p118
    %p120 = scmp.ne.s32.totalorder %s109, %s110
    %p121 = scmp.eq.s32.totalorder %s17, 0
    %p122 = por %p120, %p121
    %p123 = scmp.ne.s32.totalorder %s109, %s110
    %p124 = scmp.eq.s32.totalorder %s18, 1
    %p125 = por %p123, %p124
    %p127 = scmp.ne.s32.totalorder %s110, %s126
    %p128 = scmp.eq.s32.totalorder %s18, 0
    %p129 = por %p127, %p128
    %s130 = ssub.s32 %s19, %s31
    %s131 = ssub.s32 %s20, %s27
    %s132 = sor.u32 %s130, %s131
    %p133 = scmp.eq.s32.totalorder %s132, 0
    %s135 = sadd.s32 %s134, 1
    %s136 = scalar_select %p133, %s134, %s135
    %p139 = pneg %p133
    %p140 = scmp.eq.s32.totalorder %s12, 1
    %p141 = por %p139, %p140
    %p142 = scmp.ne.s32.totalorder %s134, %s137
    %p143 = scmp.eq.s32.totalorder %s12, 0
    %p144 = por %p142, %p143
    %p145 = scmp.ne.s32.totalorder %s134, %s137
    %p146 = scmp.eq.s32.totalorder %s17, 1
    %p147 = por %p145, %p146
    %p148 = scmp.ne.s32.totalorder %s137, %s138
    %p149 = scmp.eq.s32.totalorder %s17, 0
    %p150 = por %p148, %p149
    %p151 = scmp.ne.s32.totalorder %s137, %s138
    %p152 = scmp.eq.s32.totalorder %s18, 1
    %p153 = por %p151, %p152
    %p155 = scmp.ne.s32.totalorder %s138, %s154
    %p156 = scmp.eq.s32.totalorder %s18, 0
    %p157 = por %p155, %p156
    %s158 = ssub.s32 %s19, %s31
    %s159 = ssub.s32 %s20, %s27
    %s160 = sor.u32 %s158, %s159
    %p161 = scmp.eq.s32.totalorder %s160, 0
    %s163 = sadd.s32 %s162, 1
    %s164 = scalar_select %p161, %s162, %s163
    %p167 = pneg %p161
    %p168 = scmp.eq.s32.totalorder %s12, 1
    %p169 = por %p167, %p168
    %p170 = scmp.ne.s32.totalorder %s162, %s165
    %p171 = scmp.eq.s32.totalorder %s12, 0
    %p172 = por %p170, %p171
    %p173 = scmp.ne.s32.totalorder %s162, %s165
    %p174 = scmp.eq.s32.totalorder %s17, 1
    %p175 = por %p173, %p174
    %p176 = scmp.ne.s32.totalorder %s165, %s166
    %p177 = scmp.eq.s32.totalorder %s17, 0
    %p178 = por %p176, %p177
    %p179 = scmp.ne.s32.totalorder %s165, %s166
    %p180 = scmp.eq.s32.totalorder %s18, 1
    %p181 = por %p179, %p180
    %p183 = scmp.ne.s32.totalorder %s166, %s182
    %p184 = scmp.eq.s32.totalorder %s18, 0
    %p185 = por %p183, %p184
    %p186 = scmp.le.s32.totalorder 1, %s12
    %p187 = scmp.lt.s32.totalorder %s12, 3
    %p188 = pnand %p186, %p187
    %p189 = pneg %p188
    // Predicated region
    $region9: #{attention_block.2} parent=5 // pred_check
      _
    $region10: #{attention_block.2} parent=5 // pred_check_branch
      %191 = sbr.rel (%p188) target = $region12
    $region11: #{attention_block.2} parent=5 // pred_region
      %s192 = ssub.s32 %s12, 1
      // Predicated region
      $region13: #{attention_block.2} parent=11 // pred_check
        %p193 = pneg %p73
      $region14: #{attention_block.2} parent=11 // pred_check_branch
        %195 = sbr.rel (%p193) target = $region16
      $region15: #{attention_block.2} parent=11 // pred_region
        _
      $region16: #{attention_block.2} parent=11 // pred_fallthru
        _
      // Predicated region
      $region17: #{attention_block.2} parent=11 // pred_check
        %p196 = pneg %p94
      $region18: #{attention_block.2} parent=11 // pred_check_branch
        %198 = sbr.rel (%p196) target = $region20
      $region19: #{attention_block.2} parent=11 // pred_region
        _
      $region20: #{attention_block.2} parent=11 // pred_fallthru
        _
    $region12: #{attention_block.2} parent=5 // pred_fallthru
      _
    %p199 = scmp.lt.s32.totalorder %s12, 2
    // Predicated region
    $region21: #{attention_block.2} parent=5 // pred_check
      %p200 = pneg %p199
    $region22: #{attention_block.2} parent=5 // pred_check_branch
      %202 = sbr.rel (%p200) target = $region24
    $region23: #{attention_block.2} parent=5 // pred_region
      // Predicated region
      $region25: #{attention_block.2} parent=23 // pred_check
        %p203 = pneg %p46
      $region26: #{attention_block.2} parent=23 // pred_check_branch
        %205 = sbr.rel (%p203) target = $region28
      $region27: #{attention_block.2} parent=23 // pred_region
        %p206 = scmp.lt.s32.totalorder %s19, 1
        %s207 = scalar_select %p206, %s19, 1
        %p208 = scmp.lt.s32.totalorder %s20, 0
        %s209 = scalar_select %p208, %s20, 0
        %s210 = smul.addr %s207, 2
        %s211 = sadd.s32 %s209, %s210
        %s212 = smul.addr %s211, 4
        %s213 = scalar_lea.vmem %s0, %s212
      $region28: #{attention_block.2} parent=23 // pred_fallthru
        _
    $region24: #{attention_block.2} parent=5 // pred_fallthru
      _
    %p214 = scmp.le.s32.totalorder 1, %s12
    %p215 = scmp.lt.s32.totalorder %s12, 3
    %p216 = pnand %p214, %p215
    %p217 = pneg %p216
    // Predicated region
    $region29: #{attention_block.2} parent=5 // pred_check
      _
    $region30: #{attention_block.2} parent=5 // pred_check_branch
      %219 = sbr.rel (%p216) target = $region32
    $region31: #{attention_block.2} parent=5 // pred_region
      %s220 = ssub.s32 %s12, 1
      %p221 = scmp.lt.s32.totalorder %s21, 1
      %s222 = scalar_select %p221, %s21, 1
      %p223 = scmp.lt.s32.totalorder %s22, 0
      %s224 = scalar_select %p223, %s22, 0
      %s225 = smul.addr %s222, 2
      %s226 = sadd.s32 %s224, %s225
      %s227 = smul.addr %s226, 4
      %s228 = scalar_lea.vmem %s0, %s227
      %p229 = pneg %p52
      %p230 = pneg %p49
      %p231 = pneg %p73
      %p232 = pneg %p70
      %p233 = pneg %p94
      %p234 = pneg %p91
      %p235 = pneg %p122
      %p236 = pneg %p119
      %p237 = scmp.lt.s32.totalorder %s21, 1
      %s238 = scalar_select %p237, %s21, 1
      %p239 = scmp.lt.s32.totalorder %s22, 0
      %s240 = scalar_select %p239, %s22, 0
      %s241 = sadd.s32 %s240, %s238
      %s242 = smul.addr %s241, 4
      %s243 = scalar_lea.vmem %s3, %s242
      %p244 = pneg %p150
      %p245 = pneg %p147
      %p246 = scmp.lt.s32.totalorder %s21, 1
      %s247 = scalar_select %p246, %s21, 1
      %p248 = scmp.lt.s32.totalorder %s22, 0
      %s249 = scalar_select %p248, %s22, 0
      %s250 = sadd.s32 %s249, %s247
      %s251 = smul.addr %s250, 4
      %s252 = scalar_lea.vmem %s4, %s251
      %p253 = pneg %p178
      %p254 = pneg %p175
      %p255 = scmp.lt.s32.totalorder %s21, 1
      %s256 = scalar_select %p255, %s21, 1
      %p257 = scmp.lt.s32.totalorder %s22, 0
      %s258 = scalar_select %p257, %s22, 0
      %s259 = smul.addr %s256, 2
      %s260 = sadd.s32 %s258, %s259
      %s261 = smul.addr %s260, 4
      %s262 = scalar_lea.vmem %s5, %s261
      %p263 = scmp.lt.s32.totalorder %s21, 1
      %s264 = scalar_select %p263, %s21, 1
      %p265 = scmp.lt.s32.totalorder %s22, 0
      %s266 = scalar_select %p265, %s22, 0
      %s267 = smul.addr %s264, 2
      %s268 = sadd.s32 %s266, %s267
      %s269 = smul.addr %s268, 4
      %s270 = scalar_lea.vmem %s0, %s269
      %p271 = scmp.lt.s32.totalorder %s21, 1
      %s272 = scalar_select %p271, %s21, 1
      %p273 = scmp.lt.s32.totalorder %s22, 0
      %s274 = scalar_select %p273, %s22, 0
      %s275 = sadd.s32 %s274, %s272
      %s276 = smul.addr %s275, 4
      %s277 = scalar_lea.vmem %s3, %s276
      %p278 = scmp.lt.s32.totalorder %s21, 1
      %s279 = scalar_select %p278, %s21, 1
      %p280 = scmp.lt.s32.totalorder %s22, 0
      %s281 = scalar_select %p280, %s22, 0
      %s282 = sadd.s32 %s281, %s279
      %s283 = smul.addr %s282, 4
      %s284 = scalar_lea.vmem %s4, %s283
      %p285 = scmp.lt.s32.totalorder %s21, 1
      %s286 = scalar_select %p285, %s21, 1
      %p287 = scmp.lt.s32.totalorder %s22, 0
      %s288 = scalar_select %p287, %s22, 0
      %s289 = smul.addr %s286, 2
      %s290 = sadd.s32 %s288, %s289
      %s291 = smul.addr %s290, 4
      %s292 = scalar_lea.vmem %s5, %s291
      %v294 = vld [vmem:[%s270] sm:$0xf]
      %v295 = vld [vmem:[%s270 + $0x4] sm:$0xf]
      %v296 = vld [vmem:[%s1] sm:$0xf]
      %v297 = vld [vmem:[%s1 + $0x4] sm:$0xf]
      %v298 = vld [vmem:[%s1 + $0x8] sm:$0xf]
      %v299 = vld [vmem:[%s1 + $0xc] sm:$0xf]
      %v300 = vld [vmem:[%s2] sm:$0xff]
      %v301 = vld [vmem:[%s2 + $0x8] sm:$0xff]
      %v302 = vld [vmem:[%s2 + $0x10] sm:$0xff]
      %v303 = vld [vmem:[%s2 + $0x18] sm:$0xff]
      %305 = vset.pattern.permute.xlu0 0
      %306 = vperm.xlu0 %305, %v300
      %v307 = vpop.permute.xlu0 %306
      %310 = vset.pattern.permute.xlu0 0
      %311 = vperm.xlu0 %310, %v301
      %v312 = vpop.permute.xlu0 %311
      %315 = vset.pattern.permute.xlu0 0
      %316 = vperm.xlu0 %315, %v302
      %v317 = vpop.permute.xlu0 %316
      %320 = vset.pattern.permute.xlu0 0
      %321 = vperm.xlu0 %320, %v303
      %v322 = vpop.permute.xlu0 %321
      %v328 = vunpack.c.l.b16 %v296
      %v329 = vunpack.c.l.b16 %v297
      %v330 = vunpack.c.l.b16 %v298
      %v331 = vunpack.c.l.b16 %v299
      %v332 = vpack.c.b16 %v329, %v328
      %v333 = vpack.c.b16 %v331, %v330
      %v336 = vunpack.c.l.b16 %v294
      %v337 = vunpack.c.l.b16 %v295
      %v338 = vpack.c.b16 %v337, %v336
      %vm340 = vcmask 130048
      %v342 = vsel %vm340, %v332, 0
      %v345 = vsel %vm340, %v333, 0
      %347 = vmatpush.bf16.msra.mxu0 0
      %348 = vmatpush.bf16.msra.mxu0 0
      %349 = vmatpush.bf16.msra.mxu0 0
      %350 = vmatpush.bf16.msra.mxu0 0
      %351 = vmatpush.bf16.msra.mxu0 0
      %352 = vmatpush.bf16.msra.mxu0 0
      %353 = vmatpush.bf16.msra.mxu0 0
      %354 = vmatpush.bf16.msra.mxu0 %v338
      %355 = vmatmul.bf16.gmra.mxu0 %v342
      %v356 = vpop.f32.mrf.mxu0
      %v357 = vadd.f32 %v307, %v356
      %v358 = vpop.f32.mrf.mxu0
      %v359 = vadd.f32 %v312, %v358
      %360 = vmatmul.bf16.gmra.mxu0 %v345
      %v361 = vpop.f32.mrf.mxu0
      %v362 = vadd.f32 %v317, %v361
      %v363 = vpop.f32.mrf.mxu0
      %v364 = vadd.f32 %v322, %v363
      %365 = vdwg.mxu0
      %v366 = vpack.c.bf16 %v357, %v357
      %367 = vst [vmem:[%s277] sm:$0xf] %v366
      %v368 = vpack.c.bf16 %v359, %v359
      %369 = vst [vmem:[%s284] sm:$0xf] %v368
      %v370 = vpack.c.bf16 %v362, %v362
      %v371 = vpack.c.bf16 %v364, %v364
      %372 = vst [vmem:[%s292] sm:$0xf] %v370
      %373 = vst [vmem:[%s292 + $0x4] sm:$0xf] %v371
      %p374 = scmp.lt.s32.totalorder %s21, 1
      %s375 = scalar_select %p374, %s21, 1
      %p376 = scmp.lt.s32.totalorder %s22, 0
      %s377 = scalar_select %p376, %s22, 0
      %s378 = sadd.s32 %s377, %s375
      %s379 = smul.addr %s378, 4
      %s380 = scalar_lea.vmem %s3, %s379
      %p381 = scmp.lt.s32.totalorder %s21, 1
      %s382 = scalar_select %p381, %s21, 1
      %p383 = scmp.lt.s32.totalorder %s22, 0
      %s384 = scalar_select %p383, %s22, 0
      %s385 = sadd.s32 %s384, %s382
      %s386 = smul.addr %s385, 4
      %s387 = scalar_lea.vmem %s4, %s386
      %p388 = scmp.lt.s32.totalorder %s21, 1
      %s389 = scalar_select %p388, %s21, 1
      %p390 = scmp.lt.s32.totalorder %s22, 0
      %s391 = scalar_select %p390, %s22, 0
      %s392 = smul.addr %s389, 2
      %s393 = sadd.s32 %s391, %s392
      %s394 = smul.addr %s393, 4
      %s395 = scalar_lea.vmem %s5, %s394
      // Predicated region
      $region33: #{attention_block.2} parent=31 // pred_check
        %p396 = pneg %p119
      $region34: #{attention_block.2} parent=31 // pred_check_branch
        %398 = sbr.rel (%p396) target = $region36
      $region35: #{attention_block.2} parent=31 // pred_region
        _
      $region36: #{attention_block.2} parent=31 // pred_fallthru
        _
      // Predicated region
      $region37: #{attention_block.2} parent=31 // pred_check
        %p399 = pneg %p147
      $region38: #{attention_block.2} parent=31 // pred_check_branch
        %401 = sbr.rel (%p399) target = $region40
      $region39: #{attention_block.2} parent=31 // pred_region
        _
      $region40: #{attention_block.2} parent=31 // pred_fallthru
        _
      // Predicated region
      $region41: #{attention_block.2} parent=31 // pred_check
        %p402 = pneg %p175
      $region42: #{attention_block.2} parent=31 // pred_check_branch
        %404 = sbr.rel (%p402) target = $region44
      $region43: #{attention_block.2} parent=31 // pred_region
        _
      $region44: #{attention_block.2} parent=31 // pred_fallthru
        _
    $region32: #{attention_block.2} parent=5 // pred_fallthru
      _
    %p405 = scmp.le.s32.totalorder 2, %s12
    // Predicated region
    $region45: #{attention_block.2} parent=5 // pred_check
      %p406 = pneg %p405
    $region46: #{attention_block.2} parent=5 // pred_check_branch
      %408 = sbr.rel (%p406) target = $region48
    $region47: #{attention_block.2} parent=5 // pred_region
      %s409 = ssub.s32 %s12, 2
      // Predicated region
      $region49: #{attention_block.2} parent=47 // pred_check
        %p410 = pneg %p125
      $region50: #{attention_block.2} parent=47 // pred_check_branch
        %412 = sbr.rel (%p410) target = $region52
      $region51: #{attention_block.2} parent=47 // pred_region
        %p413 = scmp.lt.s32.totalorder %s23, 1
        %s414 = scalar_select %p413, %s23, 1
        %p415 = scmp.lt.s32.totalorder %s24, 0
        %s416 = scalar_select %p415, %s24, 0
        %s417 = sadd.s32 %s416, %s414
        %s418 = smul.addr %s417, 4
        %s419 = scalar_lea.vmem %s3, %s418
      $region52: #{attention_block.2} parent=47 // pred_fallthru
        _
      // Predicated region
      $region53: #{attention_block.2} parent=47 // pred_check
        %p420 = pneg %p153
      $region54: #{attention_block.2} parent=47 // pred_check_branch
        %422 = sbr.rel (%p420) target = $region56
      $region55: #{attention_block.2} parent=47 // pred_region
        %p423 = scmp.lt.s32.totalorder %s23, 1
        %s424 = scalar_select %p423, %s23, 1
        %p425 = scmp.lt.s32.totalorder %s24, 0
        %s426 = scalar_select %p425, %s24, 0
        %s427 = sadd.s32 %s426, %s424
        %s428 = smul.addr %s427, 4
        %s429 = scalar_lea.vmem %s4, %s428
      $region56: #{attention_block.2} parent=47 // pred_fallthru
        _
      // Predicated region
      $region57: #{attention_block.2} parent=47 // pred_check
        %p430 = pneg %p181
      $region58: #{attention_block.2} parent=47 // pred_check_branch
        %432 = sbr.rel (%p430) target = $region60
      $region59: #{attention_block.2} parent=47 // pred_region
        %p433 = scmp.lt.s32.totalorder %s23, 1
        %s434 = scalar_select %p433, %s23, 1
        %p435 = scmp.lt.s32.totalorder %s24, 0
        %s436 = scalar_select %p435, %s24, 0
        %s437 = smul.addr %s434, 2
        %s438 = sadd.s32 %s436, %s437
        %s439 = smul.addr %s438, 4
        %s440 = scalar_lea.vmem %s5, %s439
      $region60: #{attention_block.2} parent=47 // pred_fallthru
        _
    $region48: #{attention_block.2} parent=5 // pred_fallthru
      _
  $region6: #{attention_block.2} parent=0 // loop_footer
    %s16 = sadd.s32 1, %s12
  $region7: #{attention_block.2} parent=0 // loop_footer_branch
    %11 = sbr.rel target = $region3
  $region8: #{attention_block.2} parent=0 // loop_exit
    _

</llo_original>
